<compile_context>
chip_gen: v7x
topology: tpu7x:2x2x1
jax: 0.10.0
libtpu: 0.0.40
codegen_flags: <defaults>
</compile_context>

<pallas_src>
import jax
import jax.numpy as jnp
import numpy as np
from jax.experimental import pallas as pl
from jax.experimental.pallas import tpu as pltpu

HIDDEN = 128           # nn.Linear(., 128) hidden width (lane-aligned)
LANE = 128
SUBLANE = 8
BF16_SUBLANE = 16      # bf16 packs 16 rows per vreg sublane group
MAX_BATCH_TILE = 256   # keep h1/h2 intermediates near vreg-resident


def _round_up(n, m):
    return ((n + m - 1) // m) * m


def _default_use_split_w2():
    """Chips with a 128x128 MXU (v3/v4/v5*) prefer per-head 128-wide dots."""
    try:
        kind = jax.devices()[0].device_kind.lower()
    except Exception:
        return False
    return ("v5" in kind) or ("v4" in kind) or ("v3" in kind)


# ----------------------------- Pallas kernels ------------------------------ #
def _qnet_fused_kernel(x_ref, w1_ref, w2_ref, b2_ref, w3_ref, b3_ref, o_ref):
    """v6e/v7x: 256-wide block-diagonal matmuls; b1 folded into W1."""
    x = x_ref[...]                                                # (TB, D_pad) bf16
    h1 = jnp.maximum(
        jnp.dot(x, w1_ref[...], preferred_element_type=jnp.float32), 0.0)
    h2 = jnp.dot(h1.astype(jnp.bfloat16), w2_ref[...],
                 preferred_element_type=jnp.float32)
    h2 = jnp.maximum(h2 + b2_ref[...][0:1, :], 0.0)
    out = jnp.dot(h2.astype(jnp.bfloat16), w3_ref[...],
                  preferred_element_type=jnp.float32)
    o_ref[...] = (out + b3_ref[...][0:1, :]).astype(o_ref.dtype)


def _qnet_split_kernel(x_ref, w1_ref, w2_ref, b2_ref, w3_ref, b3_ref, o_ref):
    """v5e-style (128x128 MXU): per-head 128x128 dots for the W2/W3 stages."""
    x = x_ref[...]
    h1 = jnp.maximum(
        jnp.dot(x, w1_ref[...], preferred_element_type=jnp.float32), 0.0)
    b2 = b2_ref[...]
    h1a = h1[:, :HIDDEN].astype(jnp.bfloat16)
    h1b = h1[:, HIDDEN:].astype(jnp.bfloat16)
    # w2_ref is (2*HIDDEN, HIDDEN): rows [:H] = head-0 W2, rows [H:] = head-1 W2.
    h2a = jnp.dot(h1a, w2_ref[:HIDDEN, :],
                  preferred_element_type=jnp.float32) + b2[0:1, :HIDDEN]
    h2b = jnp.dot(h1b, w2_ref[HIDDEN:, :],
                  preferred_element_type=jnp.float32) + b2[0:1, HIDDEN:]
    h2a = jnp.maximum(h2a, 0.0).astype(jnp.bfloat16)
    h2b = jnp.maximum(h2b, 0.0).astype(jnp.bfloat16)
    out = (jnp.dot(h2a, w3_ref[:HIDDEN, :], preferred_element_type=jnp.float32)
           + jnp.dot(h2b, w3_ref[HIDDEN:, :], preferred_element_type=jnp.float32)
           + b3_ref[...][0:1, :])
    o_ref[...] = out.astype(o_ref.dtype)


# ----------------------- one-time weight preparation ----------------------- #
def prepare_params(params):
    """Pad / fuse / cast the per-head params ONCE (do this at init time)."""
    w1, b1 = params["w1"], params["b1"]          # (2, in_dim, 128), (2, 128)
    w2, b2 = params["w2"], params["b2"]          # (2, 128, 128),    (2, 128)
    w3, b3 = params["w3"], params["b3"]          # (2, 128, wt),     (2, wt)
    in_dim = w1.shape[1]
    wt_dim = w3.shape[-1]
    d_pad = _round_up(in_dim + 1, LANE)          # +1 bias-carrier column
    out_pad = _round_up(max(2 * wt_dim, LANE), LANE)

    # W1: heads side by side along N; row `in_dim` carries b1 (bias fold).
    w1_cat = (jnp.zeros((d_pad, 2 * HIDDEN), jnp.float32)
              .at[:in_dim, :HIDDEN].set(w1[0])
              .at[:in_dim, HIDDEN:].set(w1[1])
              .at[in_dim, :HIDDEN].set(b1[0])
              .at[in_dim, HIDDEN:].set(b1[1]))

    # W2 block-diagonal (one fused 256-wide dot on v6e/v7x).
    w2_bd = (jnp.zeros((2 * HIDDEN, 2 * HIDDEN), jnp.float32)
             .at[:HIDDEN, :HIDDEN].set(w2[0])
             .at[HIDDEN:, HIDDEN:].set(w2[1]))
    # W2 stacked (v5e split path: two 128x128 dots, no zero blocks).
    w2_split = jnp.concatenate([w2[0], w2[1]], axis=0)          # (256, 128)

    b2_bc = jnp.broadcast_to(
        jnp.concatenate([b2[0], b2[1]]).reshape(1, 2 * HIDDEN),
        (SUBLANE, 2 * HIDDEN))

    # W3 packed into one lane-dense slab:
    #   cols [0, wt)      <- Q1 output,   cols [wt, 2*wt) <- Q2 output
    w3_pk = (jnp.zeros((2 * HIDDEN, out_pad), jnp.float32)
             .at[:HIDDEN, :wt_dim].set(w3[0])
             .at[HIDDEN:, wt_dim:2 * wt_dim].set(w3[1]))
    b3_row = (jnp.zeros((out_pad,), jnp.float32)
              .at[:wt_dim].set(b3[0])
              .at[wt_dim:2 * wt_dim].set(b3[1]))
    b3_bc = jnp.broadcast_to(b3_row.reshape(1, out_pad), (SUBLANE, out_pad))

    prep = {
        "w1": w1_cat.astype(jnp.bfloat16),
        "w2_bd": w2_bd.astype(jnp.bfloat16),
        "w2_split": w2_split.astype(jnp.bfloat16),
        "b2": b2_bc.astype(jnp.float32),
        "w3": w3_pk.astype(jnp.bfloat16),
        "b3": b3_bc.astype(jnp.float32),
    }
    meta = {"in_dim": in_dim, "wt_dim": wt_dim,
            "d_pad": d_pad, "out_pad": out_pad}
    return prep, meta


# ------------------------------ glue (JAX) -------------------------------- #
def build_mlp_input(state, action_c, action_d, w, num_server, num_device):
    """Plain f32 input (matches PyTorch), used by the references."""
    B = state.shape[0]
    nc = num_server + 1
    one_hot = jax.nn.one_hot(action_d.astype(jnp.int32), nc,
                             dtype=jnp.float32)                  # (B, nd, nc)
    ac = action_c.astype(jnp.float32).reshape(B, num_device, 2)  # (B, nd, 2)
    combined = jnp.concatenate([one_hot, ac],
                               axis=-1).reshape(B, num_device * (nc + 2))
    return jnp.concatenate([state.astype(jnp.float32), combined,
                            w.astype(jnp.float32)], axis=1)


def build_mlp_input_padded(state, action_c, action_d, w,
                           num_server, num_device, d_pad):
    """Single fused concat -> bf16, lane-padded, with 1.0 bias-carrier col."""
    B = state.shape[0]
    nc = num_server + 1
    one_hot = jax.nn.one_hot(action_d.astype(jnp.int32), nc, dtype=jnp.float32)
    ac = action_c.astype(jnp.float32).reshape(B, num_device, 2)
    combined = jnp.concatenate([one_hot, ac],
                               axis=-1).reshape(B, num_device * (nc + 2))
    in_dim = state.shape[1] + combined.shape[1] + w.shape[1]
    pad_cols = d_pad - in_dim - 1
    x = jnp.concatenate(
        [state.astype(jnp.float32), combined, w.astype(jnp.float32),
         jnp.ones((B, 1), jnp.float32),                 # bias-carrier column
         jnp.zeros((B, pad_cols), jnp.float32)], axis=1)
    return x.astype(jnp.bfloat16)                        # (B, d_pad) bf16


def _run_fused_mlp(x_p, prep, *, wt_dim, d_pad, out_pad, use_split_w2):
    """x_p: (B, d_pad) bf16.  Returns (q1, q2), each (B, wt_dim) f32."""
    B = x_p.shape[0]
    tb = min(MAX_BATCH_TILE, _round_up(max(B, BF16_SUBLANE), BF16_SUBLANE))
    b_pad = _round_up(B, tb)
    nb = b_pad // tb
    if b_pad != B:
        x_p = jnp.pad(x_p, ((0, b_pad - B), (0, 0)))     # rows only, fuses

    w2 = prep["w2_split"] if use_split_w2 else prep["w2_bd"]
    kernel = _qnet_split_kernel if use_split_w2 else _qnet_fused_kernel

    w2_flops = HIDDEN * 2 * HIDDEN if use_split_w2 else 2 * HIDDEN * 2 * HIDDEN
    flops = 2 * b_pad * (d_pad * 2 * HIDDEN + w2_flops + 2 * HIDDEN * out_pad)
    bytes_accessed = (x_p.size * 2 + prep["w1"].size * 2 + w2.size * 2
                      + prep["w3"].size * 2 + prep["b2"].size * 4
                      + prep["b3"].size * 4 + b_pad * out_pad * 4)

    out = pl.pallas_call(
        kernel,
        out_shape=jax.ShapeDtypeStruct((b_pad, out_pad), jnp.float32),
        grid=(nb,),
        in_specs=[
            pl.BlockSpec((tb, d_pad), lambda i: (i, 0)),          # x tile
            pl.BlockSpec(prep["w1"].shape, lambda i: (0, 0)),     # W1 (+b1) resident
            pl.BlockSpec(w2.shape, lambda i: (0, 0)),             # W2
            pl.BlockSpec(prep["b2"].shape, lambda i: (0, 0)),     # b2 (8, 256)
            pl.BlockSpec(prep["w3"].shape, lambda i: (0, 0)),     # W3
            pl.BlockSpec(prep["b3"].shape, lambda i: (0, 0)),     # b3 (8, out_pad)
        ],
        out_specs=pl.BlockSpec((tb, out_pad), lambda i: (i, 0)),
        compiler_params=pltpu.CompilerParams(
            dimension_semantics=("parallel",)),
        cost_estimate=pl.CostEstimate(flops=flops, transcendentals=0,
                                      bytes_accessed=bytes_accessed),
    )(x_p, prep["w1"], w2, prep["b2"], prep["w3"], prep["b3"])

    return out[:B, :wt_dim], out[:B, wt_dim:2 * wt_dim]


def make_qnetwork_forward(meta, num_server, num_device, use_split_w2=None):
    if use_split_w2 is None:
        use_split_w2 = _default_use_split_w2()
    wt_dim, d_pad, out_pad = meta["wt_dim"], meta["d_pad"], meta["out_pad"]

    @jax.jit
    def fwd(prep, state, action_c, action_d, w):
        x_p = build_mlp_input_padded(state, action_c, action_d, w,
                                     num_server, num_device, d_pad)
        return _run_fused_mlp(x_p, prep, wt_dim=wt_dim, d_pad=d_pad,
                              out_pad=out_pad, use_split_w2=use_split_w2)
    return fwd


# ------------------------- deterministic init ----------------------------- #
def xavier_uniform(key, fan_in, fan_out):
    limit = float(np.sqrt(6.0 / (fan_in + fan_out)))
    return jax.random.uniform(key, (fan_in, fan_out), jnp.float32,
                              minval=-limit, maxval=limit)


def init_params(key, in_dim, wt_dim):
    keys = jax.random.split(key, 6)
    w1 = jnp.stack([xavier_uniform(keys[0], in_dim, HIDDEN),
                    xavier_uniform(keys[1], in_dim, HIDDEN)])
    w2 = jnp.stack([xavier_uniform(keys[2], HIDDEN, HIDDEN),
                    xavier_uniform(keys[3], HIDDEN, HIDDEN)])
    w3 = jnp.stack([xavier_uniform(keys[4], HIDDEN, wt_dim),
                    xavier_uniform(keys[5], HIDDEN, wt_dim)])
    return {
        "w1": w1, "b1": jnp.zeros((2, HIDDEN), jnp.float32),
        "w2": w2, "b2": jnp.zeros((2, HIDDEN), jnp.float32),
        "w3": w3, "b3": jnp.zeros((2, wt_dim), jnp.float32),
    }


# -------------------------- pure-JAX references ---------------------------- #
def reference_forward_f32(params, state, action_c, action_d, w,
                          num_server, num_device):
    x = build_mlp_input(state, action_c, action_d, w, num_server, num_device)
    outs = []
    for q in range(2):
        h1 = jax.nn.relu(x @ params["w1"][q] + params["b1"][q])
        h2 = jax.nn.relu(h1 @ params["w2"][q] + params["b2"][q])
        outs.append(h2 @ params["w3"][q] + params["b3"][q])
    return outs[0], outs[1]


def reference_forward_bf16(params, state, action_c, action_d, w,
                           num_server, num_device):
    """Same bf16-input / f32-accumulate numerics as the kernel."""
    x = build_mlp_input(state, action_c, action_d, w,
                        num_server, num_device).astype(jnp.bfloat16)
    outs = []
    for q in range(2):
        h1 = jnp.dot(x, params["w1"][q].astype(jnp.bfloat16),
                     preferred_element_type=jnp.float32) + params["b1"][q]
        h1 = jnp.maximum(h1, 0.0)
        h2 = jnp.dot(h1.astype(jnp.bfloat16),
                     params["w2"][q].astype(jnp.bfloat16),
                     preferred_element_type=jnp.float32) + params["b2"][q]
        h2 = jnp.maximum(h2, 0.0)
        outs.append(jnp.dot(h2.astype(jnp.bfloat16),
                            params["w3"][q].astype(jnp.bfloat16),
                            preferred_element_type=jnp.float32)
                    + params["b3"][q])
    return outs[0], outs[1]


# --------------------------------- main ------------------------------------ #
if __name__ == "__main__":
    # Small, module-consistent shapes.
    B = 2
    state_dim = 16
    numberOfServer = 3
    numberOfDevice = 4
    wt_dim = 4
    out_c = numberOfDevice * 2                        # 8
    out_d = (numberOfServer + 1) * numberOfDevice     # 16
    in_dim = state_dim + out_c + out_d + wt_dim       # 44

    key = jax.random.PRNGKey(0)
    k_state, k_ac, k_ad, k_w, k_param = jax.random.split(key, 5)

    state = jax.random.normal(k_state, (B, state_dim), jnp.float32)
    action_c = jax.random.normal(k_ac, (B, out_c), jnp.float32)
    action_d = jax.random.randint(k_ad, (B, numberOfDevice), 0,
                                  numberOfServer + 1, jnp.int32)
    w = jax.random.uniform(k_w, (B, wt_dim), jnp.float32)

    params = init_params(k_param, in_dim, wt_dim)

    # One-time prep (all padding / fusion / bias-fold / bf16 cast).
    prep, meta = prepare_params(params)
    prep = jax.tree_util.tree_map(jax.block_until_ready, prep)

    qnet_forward = make_qnetwork_forward(meta, numberOfServer, numberOfDevice)
    q1, q2 = qnet_forward(prep, state, action_c, action_d, w)
    jax.block_until_ready((q1, q2))

    # Check against a bf16-matched reference (same numerics).
    rb1, rb2 = reference_forward_bf16(params, state, action_c, action_d, w,
                                      numberOfServer, numberOfDevice)
    np.testing.assert_allclose(np.asarray(q1), np.asarray(rb1),
                               rtol=2e-3, atol=2e-3)
    np.testing.assert_allclose(np.asarray(q2), np.asarray(rb2),
                               rtol=2e-3, atol=2e-3)

    # Sanity check against the full-f32 reference (bf16 weights => looser tol).
    r1, r2 = reference_forward_f32(params, state, action_c, action_d, w,
                                   numberOfServer, numberOfDevice)
    np.testing.assert_allclose(np.asarray(q1), np.asarray(r1),
                               rtol=5e-2, atol=5e-2)
    np.testing.assert_allclose(np.asarray(q2), np.asarray(r2),
                               rtol=5e-2, atol=5e-2)

    print("KERNEL_OK")
</pallas_src>

<mosaic_0001>
module attributes {stable_mosaic.version = 11 : i64} {
  func.func @_qnet_fused_kernel(%arg0: i32, %arg1: memref<16x128xbf16, #tpu.memory_space<vmem>>, %arg2: memref<128x256xbf16, #tpu.memory_space<vmem>>, %arg3: memref<256x256xbf16, #tpu.memory_space<vmem>>, %arg4: memref<8x256xf32, #tpu.memory_space<vmem>>, %arg5: memref<256x128xbf16, #tpu.memory_space<vmem>>, %arg6: memref<8x128xf32, #tpu.memory_space<vmem>>, %arg7: memref<16x128xf32, #tpu.memory_space<vmem>>) attributes {dimension_semantics = [#tpu.dimension_semantics<parallel>], iteration_bounds = array<i64: 1>, scalar_prefetch = 0 : i64, scratch_operands = 0 : i64, tpu.core_type = #tpu.core_type<tc>, window_params = [{transform_indices = @transform_0, window_bounds = array<i64: 16, 128>}, {pipeline_mode = #tpu.pipeline_mode<synchronous>, transform_indices = @transform_1, window_bounds = array<i64: 128, 256>}, {pipeline_mode = #tpu.pipeline_mode<synchronous>, transform_indices = @transform_2, window_bounds = array<i64: 256, 256>}, {pipeline_mode = #tpu.pipeline_mode<synchronous>, transform_indices = @transform_3, window_bounds = array<i64: 8, 256>}, {pipeline_mode = #tpu.pipeline_mode<synchronous>, transform_indices = @transform_4, window_bounds = array<i64: 256, 128>}, {pipeline_mode = #tpu.pipeline_mode<synchronous>, transform_indices = @transform_5, window_bounds = array<i64: 8, 128>}, {transform_indices = @transform_6, window_bounds = array<i64: 16, 128>}]} {
    %c0 = arith.constant 0 : index
    %c0_0 = arith.constant 0 : index
    %0 = vector.load %arg1[%c0, %c0_0] : memref<16x128xbf16, #tpu.memory_space<vmem>>, vector<16x128xbf16>
    %c0_1 = arith.constant 0 : index
    %c0_2 = arith.constant 0 : index
    %1 = vector.load %arg2[%c0_1, %c0_2] : memref<128x256xbf16, #tpu.memory_space<vmem>>, vector<128x256xbf16>
    %cst = arith.constant dense<0.000000e+00> : vector<16x256xf32>
    %2 = tpu.matmul %0, %1, %cst {dimension_numbers = #tpu.dot_dimension_numbers<[1], [0], [0], [1], [0, 0, 1, 1], [], []>} : vector<16x128xbf16>, vector<128x256xbf16>, vector<16x256xf32> -> vector<16x256xf32>
    %cst_3 = arith.constant 0.000000e+00 : f32
    %3 = vector.broadcast %cst_3 : f32 to vector<16x256xf32>
    %4 = arith.maximumf %2, %3 : vector<16x256xf32>
    %5 = arith.truncf %4 : vector<16x256xf32> to vector<16x256xbf16>
    %c0_4 = arith.constant 0 : index
    %c0_5 = arith.constant 0 : index
    %6 = vector.load %arg3[%c0_4, %c0_5] : memref<256x256xbf16, #tpu.memory_space<vmem>>, vector<256x256xbf16>
    %cst_6 = arith.constant dense<0.000000e+00> : vector<16x256xf32>
    %7 = tpu.matmul %5, %6, %cst_6 {dimension_numbers = #tpu.dot_dimension_numbers<[1], [0], [0], [1], [0, 0, 1, 1], [], []>} : vector<16x256xbf16>, vector<256x256xbf16>, vector<16x256xf32> -> vector<16x256xf32>
    %c0_7 = arith.constant 0 : index
    %c0_8 = arith.constant 0 : index
    %8 = vector.load %arg4[%c0_7, %c0_8] : memref<8x256xf32, #tpu.memory_space<vmem>>, vector<8x256xf32>
    %9 = vector.extract_strided_slice %8 {offsets = [0, 0], sizes = [1, 256], strides = [1, 1]} : vector<8x256xf32> to vector<1x256xf32>
    %10 = vector.broadcast %9 : vector<1x256xf32> to vector<16x256xf32>
    %11 = arith.addf %7, %10 : vector<16x256xf32>
    %cst_9 = arith.constant 0.000000e+00 : f32
    %12 = vector.broadcast %cst_9 : f32 to vector<16x256xf32>
    %13 = arith.maximumf %11, %12 : vector<16x256xf32>
    %14 = arith.truncf %13 : vector<16x256xf32> to vector<16x256xbf16>
    %c0_10 = arith.constant 0 : index
    %c0_11 = arith.constant 0 : index
    %15 = vector.load %arg5[%c0_10, %c0_11] : memref<256x128xbf16, #tpu.memory_space<vmem>>, vector<256x128xbf16>
    %cst_12 = arith.constant dense<0.000000e+00> : vector<16x128xf32>
    %16 = tpu.matmul %14, %15, %cst_12 {dimension_numbers = #tpu.dot_dimension_numbers<[1], [0], [0], [1], [0, 0, 1, 1], [], []>} : vector<16x256xbf16>, vector<256x128xbf16>, vector<16x128xf32> -> vector<16x128xf32>
    %c0_13 = arith.constant 0 : index
    %c0_14 = arith.constant 0 : index
    %17 = vector.load %arg6[%c0_13, %c0_14] : memref<8x128xf32, #tpu.memory_space<vmem>>, vector<8x128xf32>
    %18 = vector.extract_strided_slice %17 {offsets = [0, 0], sizes = [1, 128], strides = [1, 1]} : vector<8x128xf32> to vector<1x128xf32>
    %19 = vector.broadcast %18 : vector<1x128xf32> to vector<16x128xf32>
    %20 = arith.addf %16, %19 : vector<16x128xf32>
    %c0_15 = arith.constant 0 : index
    %c0_16 = arith.constant 0 : index
    %21 = vector.load %arg7[%c0_15, %c0_16] : memref<16x128xf32, #tpu.memory_space<vmem>>, vector<16x128xf32>
    tpu.vector_store %arg7[%c0_15, %c0_16], %20 {strides = array<i32>} : memref<16x128xf32, #tpu.memory_space<vmem>>, vector<16x128xf32>,
    return
  }
  func.func @transform_0(%arg0: i32) -> (i32, i32) {
    %c0_i32 = arith.constant 0 : i32
    %c0_i32_0 = arith.constant 0 : i32
    return %arg0, %c0_i32 : i32, i32
  }
  func.func @transform_1(%arg0: i32) -> (i32, i32) {
    %c0_i32 = arith.constant 0 : i32
    %c0_i32_0 = arith.constant 0 : i32
    %c0_i32_1 = arith.constant 0 : i32
    return %c0_i32, %c0_i32_0 : i32, i32
  }
  func.func @transform_2(%arg0: i32) -> (i32, i32) {
    %c0_i32 = arith.constant 0 : i32
    %c0_i32_0 = arith.constant 0 : i32
    %c0_i32_1 = arith.constant 0 : i32
    return %c0_i32, %c0_i32_0 : i32, i32
  }
  func.func @transform_3(%arg0: i32) -> (i32, i32) {
    %c0_i32 = arith.constant 0 : i32
    %c0_i32_0 = arith.constant 0 : i32
    %c0_i32_1 = arith.constant 0 : i32
    return %c0_i32, %c0_i32_0 : i32, i32
  }
  func.func @transform_4(%arg0: i32) -> (i32, i32) {
    %c0_i32 = arith.constant 0 : i32
    %c0_i32_0 = arith.constant 0 : i32
    %c0_i32_1 = arith.constant 0 : i32
    return %c0_i32, %c0_i32_0 : i32, i32
  }
  func.func @transform_5(%arg0: i32) -> (i32, i32) {
    %c0_i32 = arith.constant 0 : i32
    %c0_i32_0 = arith.constant 0 : i32
    %c0_i32_1 = arith.constant 0 : i32
    return %c0_i32, %c0_i32_0 : i32, i32
  }
  func.func @transform_6(%arg0: i32) -> (i32, i32) {
    %c0_i32 = arith.constant 0 : i32
    %c0_i32_0 = arith.constant 0 : i32
    return %arg0, %c0_i32 : i32, i32
  }
}

</mosaic_0001>

<llo_original>
// kernel: fwd.1
$region0: #{fwd.1}
  #allocation0 [shape = 'u32[]', space=smem, size = 0x4, offset = 0x4, fixed_abs, tag = 'smem constant byte address 0x4 - core index']
  #allocation1 [shape = 'u32[144,128]{1,0:T(1,128)}', space=vmem, size = 0x12000, scoped, tag = 'internal scratch']
  %s0 = inlined_call_operand.vmem [shape: bf16[16,128], index: 0, kind: input, shape index: {}]
  %s1 = inlined_call_operand.hbm [shape: bf16[128,256], index: 1, kind: input, shape index: {}]
  %s2 = inlined_call_operand.hbm [shape: bf16[256,256], index: 2, kind: input, shape index: {}]
  %s3 = inlined_call_operand.vmem [shape: f32[8,256], index: 3, kind: input, shape index: {}]
  %s4 = inlined_call_operand.hbm [shape: bf16[256,128], index: 4, kind: input, shape index: {}]
  %s5 = inlined_call_operand.vmem [shape: f32[8,128], index: 5, kind: input, shape index: {}]
  %s6 = inlined_call_operand.vmem [shape: f32[16,128], index: 6, kind: output, shape index: {}]
  %s7 = sld [smem:[#allocation0]]
  $region46: #{fwd.1} parent=0
    _
  %s9 = ssub.s32 1, %s7
  %s10 = scalar_select 0, %s9, %s7
  $region1: #{fwd.1} parent=0
    #allocation2 [shape = 'u8[65536]{0}', space=vmem, size = 0x10000, scoped, tag = 'input window, operand 1, single buffered']
    #allocation3 [shape = 's32[1]{0}', space=sflag, size = 0x4, scoped, tag = 'scoped memory for fwd.1']
    #allocation4 [shape = 'u8[131072]{0}', space=vmem, size = 0x20000, scoped, tag = 'input window, operand 2, single buffered']
    #allocation5 [shape = 's32[1]{0}', space=sflag, size = 0x4, scoped, tag = 'scoped memory for fwd.1']
    #allocation6 [shape = 'u8[65536]{0}', space=vmem, size = 0x10000, scoped, tag = 'input window, operand 4, single buffered']
    %11 = vsyncpa [#allocation3], 0
    %12 = vsyncpa [#allocation5], 0
    // Predicated region
    $region2: #{fwd.1} parent=1 // pred_check
      _
    $region3: #{fwd.1} parent=1 // pred_check_branch
      %14 = sbr.rel (0) target = $region5
    $region4: #{fwd.1} parent=1 // pred_region
      _
    $region5: #{fwd.1} parent=1 // pred_fallthru
      _
    // Predicated region
    $region6: #{fwd.1} parent=1 // pred_check
      _
    $region7: #{fwd.1} parent=1 // pred_check_branch
      %16 = sbr.rel (0) target = $region9
    $region8: #{fwd.1} parent=1 // pred_region
      %s18 = ssub.s32 2048, 2048
      %19 = vsyncadd [#allocation3], %s18
      %s20 = sshll.u32 [#allocation2], 4
      %s21 = int_to_ptr.vmem [resolvable:$true] %s20
      %26 = dma.hbm_to_vmem [thread:$0]  %s1, 2048, %s21, [#allocation3], 128, 128, 8
    $region9: #{fwd.1} parent=1 // pred_fallthru
      _
    // Predicated region
    $region10: #{fwd.1} parent=1 // pred_check
      _
    $region11: #{fwd.1} parent=1 // pred_check_branch
      %28 = sbr.rel (0) target = $region13
    $region12: #{fwd.1} parent=1 // pred_region
      %s30 = ssub.s32 4096, 4096
      %31 = vsyncadd [#allocation5], %s30
      %s32 = sshll.u32 [#allocation4], 4
      %s33 = int_to_ptr.vmem [resolvable:$true] %s32
      %38 = dma.hbm_to_vmem [thread:$0]  %s2, 4096, %s33, [#allocation5], 128, 128, 8
    $region13: #{fwd.1} parent=1 // pred_fallthru
      _
    // Predicated region
    $region14: #{fwd.1} parent=1 // pred_check
      _
    $region15: #{fwd.1} parent=1 // pred_check_branch
      %40 = sbr.rel (0) target = $region17
    $region16: #{fwd.1} parent=1 // pred_region
      _
    $region17: #{fwd.1} parent=1 // pred_fallthru
      _
    // Predicated region
    $region18: #{fwd.1} parent=1 // pred_check
      _
    $region19: #{fwd.1} parent=1 // pred_check_branch
      %42 = sbr.rel (0) target = $region21
    $region20: #{fwd.1} parent=1 // pred_region
      %s44 = ssub.s32 2048, 2048
      %45 = vsyncadd [#allocation5], %s44
      %s46 = sshll.u32 [#allocation6], 4
      %s47 = int_to_ptr.vmem [resolvable:$true] %s46
      %52 = dma.hbm_to_vmem [thread:$0]  %s4, 2048, %s47, [#allocation5], 64, 64, 4
    $region21: #{fwd.1} parent=1 // pred_fallthru
      _
    // Predicated region
    $region22: #{fwd.1} parent=1 // pred_check
      _
    $region23: #{fwd.1} parent=1 // pred_check_branch
      %54 = sbr.rel (0) target = $region25
    $region24: #{fwd.1} parent=1 // pred_region
      _
    $region25: #{fwd.1} parent=1 // pred_fallthru
      _
    // Predicated region
    $region26: #{fwd.1} parent=1 // pred_check
      _
    $region27: #{fwd.1} parent=1 // pred_check_branch
      %56 = sbr.rel (0) target = $region29
    $region28: #{fwd.1} parent=1 // pred_region
      %57 = dma.done [#allocation3], 2048
    $region29: #{fwd.1} parent=1 // pred_fallthru
      _
    // Predicated region
    $region30: #{fwd.1} parent=1 // pred_check
      _
    $region31: #{fwd.1} parent=1 // pred_check_branch
      %59 = sbr.rel (0) target = $region33
    $region32: #{fwd.1} parent=1 // pred_region
      %60 = dma.done [#allocation5], 4096
    $region33: #{fwd.1} parent=1 // pred_fallthru
      _
    // Predicated region
    $region34: #{fwd.1} parent=1 // pred_check
      _
    $region35: #{fwd.1} parent=1 // pred_check_branch
      %62 = sbr.rel (0) target = $region37
    $region36: #{fwd.1} parent=1 // pred_region
      %63 = dma.done [#allocation5], 2048
    $region37: #{fwd.1} parent=1 // pred_fallthru
      _
    %v65 = vld [vmem:[%s0] sm:$0xf]
    %v66 = vld [vmem:[%s0 + $0x4] sm:$0xf]
    %v67 = vld [vmem:[#allocation2] sm:$0xff]
    %v68 = vld [vmem:[#allocation2 + $0x8] sm:$0xff]
    %v69 = vld [vmem:[#allocation2 + $0x10] sm:$0xff]
    %v70 = vld [vmem:[#allocation2 + $0x18] sm:$0xff]
    %v71 = vld [vmem:[#allocation2 + $0x20] sm:$0xff]
    %v72 = vld [vmem:[#allocation2 + $0x28] sm:$0xff]
    %v73 = vld [vmem:[#allocation2 + $0x30] sm:$0xff]
    %v74 = vld [vmem:[#allocation2 + $0x38] sm:$0xff]
    %v75 = vld [vmem:[#allocation2 + $0x40] sm:$0xff]
    %v76 = vld [vmem:[#allocation2 + $0x48] sm:$0xff]
    %v77 = vld [vmem:[#allocation2 + $0x50] sm:$0xff]
    %v78 = vld [vmem:[#allocation2 + $0x58] sm:$0xff]
    %v79 = vld [vmem:[#allocation2 + $0x60] sm:$0xff]
    %v80 = vld [vmem:[#allocation2 + $0x68] sm:$0xff]
    %v81 = vld [vmem:[#allocation2 + $0x70] sm:$0xff]
    %v82 = vld [vmem:[#allocation2 + $0x78] sm:$0xff]
    %v85 = vunpack.c.l.b16 %v65
    %v86 = vunpack.c.l.b16 %v66
    %v87 = vpack.c.b16 %v86, %v85
    %v105 = vunpack.c.l.b16 %v67
    %v106 = vunpack.c.h.b16 %v67
    %v107 = vunpack.c.l.b16 %v68
    %v108 = vunpack.c.h.b16 %v68
    %v109 = vunpack.c.l.b16 %v69
    %v110 = vunpack.c.h.b16 %v69
    %v111 = vunpack.c.l.b16 %v70
    %v112 = vunpack.c.h.b16 %v70
    %v113 = vunpack.c.l.b16 %v71
    %v114 = vunpack.c.h.b16 %v71
    %v115 = vunpack.c.l.b16 %v72
    %v116 = vunpack.c.h.b16 %v72
    %v117 = vunpack.c.l.b16 %v73
    %v118 = vunpack.c.h.b16 %v73
    %v119 = vunpack.c.l.b16 %v74
    %v120 = vunpack.c.h.b16 %v74
    %v121 = vunpack.c.l.b16 %v75
    %v122 = vunpack.c.h.b16 %v75
    %v123 = vunpack.c.l.b16 %v76
    %v124 = vunpack.c.h.b16 %v76
    %v125 = vunpack.c.l.b16 %v77
    %v126 = vunpack.c.h.b16 %v77
    %v127 = vunpack.c.l.b16 %v78
    %v128 = vunpack.c.h.b16 %v78
    %v129 = vunpack.c.l.b16 %v79
    %v130 = vunpack.c.h.b16 %v79
    %v131 = vunpack.c.l.b16 %v80
    %v132 = vunpack.c.h.b16 %v80
    %v133 = vunpack.c.l.b16 %v81
    %v134 = vunpack.c.h.b16 %v81
    %v135 = vunpack.c.l.b16 %v82
    %v136 = vunpack.c.h.b16 %v82
    %v137 = vpack.c.b16 %v107, %v105
    %v138 = vpack.c.b16 %v108, %v106
    %v139 = vpack.c.b16 %v111, %v109
    %v140 = vpack.c.b16 %v112, %v110
    %v141 = vpack.c.b16 %v115, %v113
    %v142 = vpack.c.b16 %v116, %v114
    %v143 = vpack.c.b16 %v119, %v117
    %v144 = vpack.c.b16 %v120, %v118
    %v145 = vpack.c.b16 %v123, %v121
    %v146 = vpack.c.b16 %v124, %v122
    %v147 = vpack.c.b16 %v127, %v125
    %v148 = vpack.c.b16 %v128, %v126
    %v149 = vpack.c.b16 %v131, %v129
    %v150 = vpack.c.b16 %v132, %v130
    %v151 = vpack.c.b16 %v135, %v133
    %v152 = vpack.c.b16 %v136, %v134
    %169 = vmatprep.subr.bf16.mxu0 %v138
    %170 = vmatpush1.bf16.msra.mxu0 %v137
    %171 = vmatprep.subr.bf16.mxu0 %v140
    %172 = vmatpush1.bf16.msra.mxu0 %v139
    %173 = vmatprep.subr.bf16.mxu0 %v142
    %174 = vmatpush1.bf16.msra.mxu0 %v141
    %175 = vmatprep.subr.bf16.mxu0 %v144
    %176 = vmatpush1.bf16.msra.mxu0 %v143
    %177 = vmatprep.subr.bf16.mxu0 %v146
    %178 = vmatpush1.bf16.msra.mxu0 %v145
    %179 = vmatprep.subr.bf16.mxu0 %v148
    %180 = vmatpush1.bf16.msra.mxu0 %v147
    %181 = vmatprep.subr.bf16.mxu0 %v150
    %182 = vmatpush1.bf16.msra.mxu0 %v149
    %183 = vmatprep.subr.bf16.mxu0 %v152
    %184 = vmatpush1.bf16.msra.mxu0 %v151
    %185 = vmatprep.subr.bf16.mxu0 0
    %186 = vmatpush1.bf16.msra.mxu0 0
    %187 = vmatprep.subr.bf16.mxu0 0
    %188 = vmatpush1.bf16.msra.mxu0 0
    %189 = vmatprep.subr.bf16.mxu0 0
    %190 = vmatpush1.bf16.msra.mxu0 0
    %191 = vmatprep.subr.bf16.mxu0 0
    %192 = vmatpush1.bf16.msra.mxu0 0
    %193 = vmatprep.subr.bf16.mxu0 0
    %194 = vmatpush1.bf16.msra.mxu0 0
    %195 = vmatprep.subr.bf16.mxu0 0
    %196 = vmatpush1.bf16.msra.mxu0 0
    %197 = vmatprep.subr.bf16.mxu0 0
    %198 = vmatpush1.bf16.msra.mxu0 0
    %199 = vmatprep.subr.bf16.mxu0 0
    %200 = vmatpush1.bf16.msra.mxu0 0
    %201 = vmatprep.mubr.bf16.mxu0 0
    %202 = vmatmul.mubr.bf16.gmra.mrb[0].mxu0 %v87
    %v203 = vpop.f32.mrb[0].mxu0
    %v204 = vadd.f32 0.0, %v203
    %v205 = vpop.f32.mrb[0].mxu0
    %v206 = vadd.f32 0.0, %v205
    %v207 = vpop.f32.mrb[0].mxu0
    %v208 = vadd.f32 0.0, %v207
    %v209 = vpop.f32.mrb[0].mxu0
    %v210 = vadd.f32 0.0, %v209
    %211 = vdwg.mxu0
    %v212 = vmax.f32 %v204, 0.0
    %v213 = vmax.f32 %v206, 0.0
    %v214 = vmax.f32 %v208, 0.0
    %v215 = vmax.f32 %v210, 0.0
    %v216 = vpack.c.bf16 %v214, %v212
    %v217 = vpack.c.bf16 %v215, %v213
    %v218 = vld [vmem:[#allocation4] sm:$0xff]
    %v219 = vld [vmem:[#allocation4 + $0x8] sm:$0xff]
    %v220 = vld [vmem:[#allocation4 + $0x10] sm:$0xff]
    %v221 = vld [vmem:[#allocation4 + $0x18] sm:$0xff]
    %v222 = vld [vmem:[#allocation4 + $0x20] sm:$0xff]
    %v223 = vld [vmem:[#allocation4 + $0x28] sm:$0xff]
    %v224 = vld [vmem:[#allocation4 + $0x30] sm:$0xff]
    %v225 = vld [vmem:[#allocation4 + $0x38] sm:$0xff]
    %v226 = vld [vmem:[#allocation4 + $0x40] sm:$0xff]
    %v227 = vld [vmem:[#allocation4 + $0x48] sm:$0xff]
    %v228 = vld [vmem:[#allocation4 + $0x50] sm:$0xff]
    %v229 = vld [vmem:[#allocation4 + $0x58] sm:$0xff]
    %v230 = vld [vmem:[#allocation4 + $0x60] sm:$0xff]
    %v231 = vld [vmem:[#allocation4 + $0x68] sm:$0xff]
    %v232 = vld [vmem:[#allocation4 + $0x70] sm:$0xff]
    %v233 = vld [vmem:[#allocation4 + $0x78] sm:$0xff]
    %v234 = vld [vmem:[#allocation4 + $0x80] sm:$0xff]
    %v235 = vld [vmem:[#allocation4 + $0x88] sm:$0xff]
    %v236 = vld [vmem:[#allocation4 + $0x90] sm:$0xff]
    %v237 = vld [vmem:[#allocation4 + $0x98] sm:$0xff]
    %v238 = vld [vmem:[#allocation4 + $0xa0] sm:$0xff]
    %v239 = vld [vmem:[#allocation4 + $0xa8] sm:$0xff]
    %v240 = vld [vmem:[#allocation4 + $0xb0] sm:$0xff]
    %v241 = vld [vmem:[#allocation4 + $0xb8] sm:$0xff]
    %v242 = vld [vmem:[#allocation4 + $0xc0] sm:$0xff]
    %v243 = vld [vmem:[#allocation4 + $0xc8] sm:$0xff]
    %v244 = vld [vmem:[#allocation4 + $0xd0] sm:$0xff]
    %v245 = vld [vmem:[#allocation4 + $0xd8] sm:$0xff]
    %v246 = vld [vmem:[#allocation4 + $0xe0] sm:$0xff]
    %v247 = vld [vmem:[#allocation4 + $0xe8] sm:$0xff]
    %v248 = vld [vmem:[#allocation4 + $0xf0] sm:$0xff]
    %v249 = vld [vmem:[#allocation4 + $0xf8] sm:$0xff]
    %v250 = vld [vmem:[%s3] sm:$0xff]
    %v251 = vld [vmem:[%s3 + $0x8] sm:$0xff]
    %v252 = vlaneseq
    %v253 = vshrl.u32 %v252, 7
    %v254 = vsub.s32 0, %v253
    %v255 = vrot.slane %v250, %v254
    %v256 = vlaneseq
    %v257 = vshrl.u32 %v256, 7
    %v258 = vsub.s32 0, %v257
    %v259 = vrot.slane %v251, %v258
    %v292 = vunpack.c.l.b16 %v218
    %v293 = vunpack.c.h.b16 %v218
    %v294 = vunpack.c.l.b16 %v219
    %v295 = vunpack.c.h.b16 %v219
    %v296 = vunpack.c.l.b16 %v220
    %v297 = vunpack.c.h.b16 %v220
    %v298 = vunpack.c.l.b16 %v221
    %v299 = vunpack.c.h.b16 %v221
    %v300 = vunpack.c.l.b16 %v222
    %v301 = vunpack.c.h.b16 %v222
    %v302 = vunpack.c.l.b16 %v223
    %v303 = vunpack.c.h.b16 %v223
    %v304 = vunpack.c.l.b16 %v224
    %v305 = vunpack.c.h.b16 %v224
    %v306 = vunpack.c.l.b16 %v225
    %v307 = vunpack.c.h.b16 %v225
    %v308 = vunpack.c.l.b16 %v226
    %v309 = vunpack.c.h.b16 %v226
    %v310 = vunpack.c.l.b16 %v227
    %v311 = vunpack.c.h.b16 %v227
    %v312 = vunpack.c.l.b16 %v228
    %v313 = vunpack.c.h.b16 %v228
    %v314 = vunpack.c.l.b16 %v229
    %v315 = vunpack.c.h.b16 %v229
    %v316 = vunpack.c.l.b16 %v230
    %v317 = vunpack.c.h.b16 %v230
    %v318 = vunpack.c.l.b16 %v231
    %v319 = vunpack.c.h.b16 %v231
    %v320 = vunpack.c.l.b16 %v232
    %v321 = vunpack.c.h.b16 %v232
    %v322 = vunpack.c.l.b16 %v233
    %v323 = vunpack.c.h.b16 %v233
    %v324 = vunpack.c.l.b16 %v234
    %v325 = vunpack.c.h.b16 %v234
    %v326 = vunpack.c.l.b16 %v235
    %v327 = vunpack.c.h.b16 %v235
    %v328 = vunpack.c.l.b16 %v236
    %v329 = vunpack.c.h.b16 %v236
    %v330 = vunpack.c.l.b16 %v237
    %v331 = vunpack.c.h.b16 %v237
    %v332 = vunpack.c.l.b16 %v238
    %v333 = vunpack.c.h.b16 %v238
    %v334 = vunpack.c.l.b16 %v239
    %v335 = vunpack.c.h.b16 %v239
    %v336 = vunpack.c.l.b16 %v240
    %v337 = vunpack.c.h.b16 %v240
    %v338 = vunpack.c.l.b16 %v241
    %v339 = vunpack.c.h.b16 %v241
    %v340 = vunpack.c.l.b16 %v242
    %v341 = vunpack.c.h.b16 %v242
    %v342 = vunpack.c.l.b16 %v243
    %v343 = vunpack.c.h.b16 %v243
    %v344 = vunpack.c.l.b16 %v244
    %v345 = vunpack.c.h.b16 %v244
    %v346 = vunpack.c.l.b16 %v245
    %v347 = vunpack.c.h.b16 %v245
    %v348 = vunpack.c.l.b16 %v246
    %v349 = vunpack.c.h.b16 %v246
    %v350 = vunpack.c.l.b16 %v247
    %v351 = vunpack.c.h.b16 %v247
    %v352 = vunpack.c.l.b16 %v248
    %v353 = vunpack.c.h.b16 %v248
    %v354 = vunpack.c.l.b16 %v249
    %v355 = vunpack.c.h.b16 %v249
    %v356 = vpack.c.b16 %v294, %v292
    %v357 = vpack.c.b16 %v295, %v293
    %v358 = vpack.c.b16 %v298, %v296
    %v359 = vpack.c.b16 %v299, %v297
    %v360 = vpack.c.b16 %v302, %v300
    %v361 = vpack.c.b16 %v303, %v301
    %v362 = vpack.c.b16 %v306, %v304
    %v363 = vpack.c.b16 %v307, %v305
    %v364 = vpack.c.b16 %v310, %v308
    %v365 = vpack.c.b16 %v311, %v309
    %v366 = vpack.c.b16 %v314, %v312
    %v367 = vpack.c.b16 %v315, %v313
    %v368 = vpack.c.b16 %v318, %v316
    %v369 = vpack.c.b16 %v319, %v317
    %v370 = vpack.c.b16 %v322, %v320
    %v371 = vpack.c.b16 %v323, %v321
    %v372 = vpack.c.b16 %v326, %v324
    %v373 = vpack.c.b16 %v327, %v325
    %v374 = vpack.c.b16 %v330, %v328
    %v375 = vpack.c.b16 %v331, %v329
    %v376 = vpack.c.b16 %v334, %v332
    %v377 = vpack.c.b16 %v335, %v333
    %v378 = vpack.c.b16 %v338, %v336
    %v379 = vpack.c.b16 %v339, %v337
    %v380 = vpack.c.b16 %v342, %v340
    %v381 = vpack.c.b16 %v343, %v341
    %v382 = vpack.c.b16 %v346, %v344
    %v383 = vpack.c.b16 %v347, %v345
    %v384 = vpack.c.b16 %v350, %v348
    %v385 = vpack.c.b16 %v351, %v349
    %v386 = vpack.c.b16 %v354, %v352
    %v387 = vpack.c.b16 %v355, %v353
    %420 = vmatprep.subr.bf16.mxu0 %v357
    %421 = vmatpush1.bf16.msra.mxu0 %v356
    %422 = vmatprep.subr.bf16.mxu0 %v359
    %423 = vmatpush1.bf16.msra.mxu0 %v358
    %424 = vmatprep.subr.bf16.mxu0 %v361
    %425 = vmatpush1.bf16.msra.mxu0 %v360
    %426 = vmatprep.subr.bf16.mxu0 %v363
    %427 = vmatpush1.bf16.msra.mxu0 %v362
    %428 = vmatprep.subr.bf16.mxu0 %v365
    %429 = vmatpush1.bf16.msra.mxu0 %v364
    %430 = vmatprep.subr.bf16.mxu0 %v367
    %431 = vmatpush1.bf16.msra.mxu0 %v366
    %432 = vmatprep.subr.bf16.mxu0 %v369
    %433 = vmatpush1.bf16.msra.mxu0 %v368
    %434 = vmatprep.subr.bf16.mxu0 %v371
    %435 = vmatpush1.bf16.msra.mxu0 %v370
    %436 = vmatprep.subr.bf16.mxu0 %v373
    %437 = vmatpush1.bf16.msra.mxu0 %v372
    %438 = vmatprep.subr.bf16.mxu0 %v375
    %439 = vmatpush1.bf16.msra.mxu0 %v374
    %440 = vmatprep.subr.bf16.mxu0 %v377
    %441 = vmatpush1.bf16.msra.mxu0 %v376
    %442 = vmatprep.subr.bf16.mxu0 %v379
    %443 = vmatpush1.bf16.msra.mxu0 %v378
    %444 = vmatprep.subr.bf16.mxu0 %v381
    %445 = vmatpush1.bf16.msra.mxu0 %v380
    %446 = vmatprep.subr.bf16.mxu0 %v383
    %447 = vmatpush1.bf16.msra.mxu0 %v382
    %448 = vmatprep.subr.bf16.mxu0 %v385
    %449 = vmatpush1.bf16.msra.mxu0 %v384
    %450 = vmatprep.subr.bf16.mxu0 %v387
    %451 = vmatpush1.bf16.msra.mxu0 %v386
    %452 = vmatprep.mubr.bf16.mxu0 %v217
    %453 = vmatmul.mubr.bf16.gmra.mrb[0].mxu0 %v216
    %v454 = vpop.f32.mrb[0].mxu0
    %v455 = vadd.f32 %v255, %v454
    %v456 = vpop.f32.mrb[0].mxu0
    %v457 = vadd.f32 %v259, %v456
    %v458 = vpop.f32.mrb[0].mxu0
    %v459 = vadd.f32 %v255, %v458
    %v460 = vpop.f32.mrb[0].mxu0
    %v461 = vadd.f32 %v259, %v460
    %462 = vdwg.mxu0
    %v463 = vmax.f32 %v455, 0.0
    %v464 = vmax.f32 %v457, 0.0
    %v465 = vmax.f32 %v459, 0.0
    %v466 = vmax.f32 %v461, 0.0
    %v467 = vpack.c.bf16 %v465, %v463
    %v468 = vpack.c.bf16 %v466, %v464
    %v469 = vld [vmem:[#allocation6] sm:$0xf]
    %v470 = vld [vmem:[#allocation6 + $0x4] sm:$0xf]
    %v471 = vld [vmem:[#allocation6 + $0x8] sm:$0xf]
    %v472 = vld [vmem:[#allocation6 + $0xc] sm:$0xf]
    %v473 = vld [vmem:[#allocation6 + $0x10] sm:$0xf]
    %v474 = vld [vmem:[#allocation6 + $0x14] sm:$0xf]
    %v475 = vld [vmem:[#allocation6 + $0x18] sm:$0xf]
    %v476 = vld [vmem:[#allocation6 + $0x1c] sm:$0xf]
    %v477 = vld [vmem:[#allocation6 + $0x20] sm:$0xf]
    %v478 = vld [vmem:[#allocation6 + $0x24] sm:$0xf]
    %v479 = vld [vmem:[#allocation6 + $0x28] sm:$0xf]
    %v480 = vld [vmem:[#allocation6 + $0x2c] sm:$0xf]
    %v481 = vld [vmem:[#allocation6 + $0x30] sm:$0xf]
    %v482 = vld [vmem:[#allocation6 + $0x34] sm:$0xf]
    %v483 = vld [vmem:[#allocation6 + $0x38] sm:$0xf]
    %v484 = vld [vmem:[#allocation6 + $0x3c] sm:$0xf]
    %v485 = vld [vmem:[#allocation6 + $0x40] sm:$0xf]
    %v486 = vld [vmem:[#allocation6 + $0x44] sm:$0xf]
    %v487 = vld [vmem:[#allocation6 + $0x48] sm:$0xf]
    %v488 = vld [vmem:[#allocation6 + $0x4c] sm:$0xf]
    %v489 = vld [vmem:[#allocation6 + $0x50] sm:$0xf]
    %v490 = vld [vmem:[#allocation6 + $0x54] sm:$0xf]
    %v491 = vld [vmem:[#allocation6 + $0x58] sm:$0xf]
    %v492 = vld [vmem:[#allocation6 + $0x5c] sm:$0xf]
    %v493 = vld [vmem:[#allocation6 + $0x60] sm:$0xf]
    %v494 = vld [vmem:[#allocation6 + $0x64] sm:$0xf]
    %v495 = vld [vmem:[#allocation6 + $0x68] sm:$0xf]
    %v496 = vld [vmem:[#allocation6 + $0x6c] sm:$0xf]
    %v497 = vld [vmem:[#allocation6 + $0x70] sm:$0xf]
    %v498 = vld [vmem:[#allocation6 + $0x74] sm:$0xf]
    %v499 = vld [vmem:[#allocation6 + $0x78] sm:$0xf]
    %v500 = vld [vmem:[#allocation6 + $0x7c] sm:$0xf]
    %v501 = vld [vmem:[%s5] sm:$0xff]
    %v502 = vlaneseq
    %v503 = vshrl.u32 %v502, 7
    %v504 = vsub.s32 0, %v503
    %v505 = vrot.slane %v501, %v504
    %v538 = vunpack.c.l.b16 %v469
    %v539 = vunpack.c.l.b16 %v470
    %v540 = vunpack.c.l.b16 %v471
    %v541 = vunpack.c.l.b16 %v472
    %v542 = vunpack.c.l.b16 %v473
    %v543 = vunpack.c.l.b16 %v474
    %v544 = vunpack.c.l.b16 %v475
    %v545 = vunpack.c.l.b16 %v476
    %v546 = vunpack.c.l.b16 %v477
    %v547 = vunpack.c.l.b16 %v478
    %v548 = vunpack.c.l.b16 %v479
    %v549 = vunpack.c.l.b16 %v480
    %v550 = vunpack.c.l.b16 %v481
    %v551 = vunpack.c.l.b16 %v482
    %v552 = vunpack.c.l.b16 %v483
    %v553 = vunpack.c.l.b16 %v484
    %v554 = vunpack.c.l.b16 %v485
    %v555 = vunpack.c.l.b16 %v486
    %v556 = vunpack.c.l.b16 %v487
    %v557 = vunpack.c.l.b16 %v488
    %v558 = vunpack.c.l.b16 %v489
    %v559 = vunpack.c.l.b16 %v490
    %v560 = vunpack.c.l.b16 %v491
    %v561 = vunpack.c.l.b16 %v492
    %v562 = vunpack.c.l.b16 %v493
    %v563 = vunpack.c.l.b16 %v494
    %v564 = vunpack.c.l.b16 %v495
    %v565 = vunpack.c.l.b16 %v496
    %v566 = vunpack.c.l.b16 %v497
    %v567 = vunpack.c.l.b16 %v498
    %v568 = vunpack.c.l.b16 %v499
    %v569 = vunpack.c.l.b16 %v500
    %v570 = vpack.c.b16 %v539, %v538
    %v571 = vpack.c.b16 %v541, %v540
    %v572 = vpack.c.b16 %v543, %v542
    %v573 = vpack.c.b16 %v545, %v544
    %v574 = vpack.c.b16 %v547, %v546
    %v575 = vpack.c.b16 %v549, %v548
    %v576 = vpack.c.b16 %v551, %v550
    %v577 = vpack.c.b16 %v553, %v552
    %v578 = vpack.c.b16 %v555, %v554
    %v579 = vpack.c.b16 %v557, %v556
    %v580 = vpack.c.b16 %v559, %v558
    %v581 = vpack.c.b16 %v561, %v560
    %v582 = vpack.c.b16 %v563, %v562
    %v583 = vpack.c.b16 %v565, %v564
    %v584 = vpack.c.b16 %v567, %v566
    %v585 = vpack.c.b16 %v569, %v568
    %602 = vmatprep.subr.bf16.mxu0 0
    %603 = vmatpush1.bf16.msra.mxu0 %v570
    %604 = vmatprep.subr.bf16.mxu0 0
    %605 = vmatpush1.bf16.msra.mxu0 %v571
    %606 = vmatprep.subr.bf16.mxu0 0
    %607 = vmatpush1.bf16.msra.mxu0 %v572
    %608 = vmatprep.subr.bf16.mxu0 0
    %609 = vmatpush1.bf16.msra.mxu0 %v573
    %610 = vmatprep.subr.bf16.mxu0 0
    %611 = vmatpush1.bf16.msra.mxu0 %v574
    %612 = vmatprep.subr.bf16.mxu0 0
    %613 = vmatpush1.bf16.msra.mxu0 %v575
    %614 = vmatprep.subr.bf16.mxu0 0
    %615 = vmatpush1.bf16.msra.mxu0 %v576
    %616 = vmatprep.subr.bf16.mxu0 0
    %617 = vmatpush1.bf16.msra.mxu0 %v577
    %618 = vmatprep.subr.bf16.mxu0 0
    %619 = vmatpush1.bf16.msra.mxu0 %v578
    %620 = vmatprep.subr.bf16.mxu0 0
    %621 = vmatpush1.bf16.msra.mxu0 %v579
    %622 = vmatprep.subr.bf16.mxu0 0
    %623 = vmatpush1.bf16.msra.mxu0 %v580
    %624 = vmatprep.subr.bf16.mxu0 0
    %625 = vmatpush1.bf16.msra.mxu0 %v581
    %626 = vmatprep.subr.bf16.mxu0 0
    %627 = vmatpush1.bf16.msra.mxu0 %v582
    %628 = vmatprep.subr.bf16.mxu0 0
    %629 = vmatpush1.bf16.msra.mxu0 %v583
    %630 = vmatprep.subr.bf16.mxu0 0
    %631 = vmatpush1.bf16.msra.mxu0 %v584
    %632 = vmatprep.subr.bf16.mxu0 0
    %633 = vmatpush1.bf16.msra.mxu0 %v585
    %634 = vmatprep.mubr.bf16.mxu0 %v468
    %635 = vmatmul.mubr.bf16.gmra.mrb[0].mxu0 %v467
    %v636 = vpop.f32.mrb[0].mxu0
    %v637 = vadd.f32 %v505, %v636
    %v638 = vpop.f32.mrb[0].mxu0
    %v639 = vpop.f32.mrb[0].mxu0
    %v640 = vadd.f32 %v505, %v639
    %v641 = vpop.f32.mrb[0].mxu0
    %642 = vdwg.mxu0
    %643 = vst [vmem:[%s6] sm:$0xff] %v637
    %644 = vst [vmem:[%s6 + $0x8] sm:$0xff] %v640
    // Predicated region
    $region38: #{fwd.1} parent=1 // pred_check
      _
    $region39: #{fwd.1} parent=1 // pred_check_branch
      %646 = sbr.rel (0) target = $region41
    $region40: #{fwd.1} parent=1 // pred_region
      _
    $region41: #{fwd.1} parent=1 // pred_fallthru
      _
    // Predicated region
    $region42: #{fwd.1} parent=1 // pred_check
      _
    $region43: #{fwd.1} parent=1 // pred_check_branch
      %648 = sbr.rel (0) target = $region45
    $region44: #{fwd.1} parent=1 // pred_region
      _
    $region45: #{fwd.1} parent=1 // pred_fallthru
      _
    %649 = vsyncpa [#allocation3], 1
    %650 = vsyncpa [#allocation5], 1

</llo_original>
